<compile_context>
chip_gen: v7x
topology: tpu7x:2x2x1
jax: 0.10.0
libtpu: 0.0.40
codegen_flags: <defaults>
</compile_context>

<pallas_src>
import functools

import jax
import jax.numpy as jnp
from jax.experimental import pallas as pl
from jax.experimental.pallas import tpu as pltpu


# ----------------------------------------------------------------------------
# Fused kernel: one batch image per grid step, everything resident in VMEM.
# ----------------------------------------------------------------------------
def _fused_ir_kernel(*refs, K, H, W, has_expand, residual):
    """Shapes inside the kernel (C* are small channel counts, M = H*W on lanes):
         x_ref : (1, Cin, M)       w1_ref: (Ch, Cin)   b1_ref: (Ch, 1)
         wd_ref: (Ch, K*K)         b2_ref: (Ch, 1)
         w3_ref: (Cout, Ch)        b3_ref: (Cout, 1)
         m_ref : (K*K, M) f32 boundary masks (1 = tap reads inside the image)
         o_ref : (1, Cout, M)
    """
    if has_expand:
        (x_ref, w1_ref, b1_ref, wd_ref, b2_ref, w3_ref, b3_ref, m_ref,
         o_ref) = refs
    else:
        (x_ref, wd_ref, b2_ref, w3_ref, b3_ref, m_ref, o_ref) = refs

    M = H * W
    pad = K // 2

    x2d = x_ref[0]                                    # (Cin, M), lane-dense

    # ---- conv_in: 1x1 conv (BN scale folded into w1) + bias + ReLU ---------
    if has_expand:
        h = jnp.dot(w1_ref[...], x2d, preferred_element_type=jnp.float32)
        h = jnp.maximum(h + b1_ref[...], 0.0)         # (Ch, M)
    else:
        h = x2d

    # ---- conv_dw: depthwise KxK via lane rotations + boundary masks --------
    # A tap at spatial offset (dr, dc) is a shift by dr*W + dc along the flat
    # spatial axis; out-of-image reads are zeroed by the precomputed masks
    # (this reproduces the zero-padding semantics exactly).
    wd = wd_ref[...]                                  # hoisted (Ch, K*K)
    masks = m_ref[...]                                # hoisted (K*K, M)
    hh = jnp.concatenate([h, h], axis=1)              # (Ch, 2M) rotation buffer
    acc = jnp.zeros_like(h)
    tap = 0
    for kh in range(K):                               # statically unrolled
        for kw in range(K):
            d = (kh - pad) * W + (kw - pad)           # flat source offset
            s = d % M
            shifted = h if s == 0 else hh[:, s:s + M]
            acc = acc + shifted * masks[tap:tap + 1, :] * wd[:, tap:tap + 1]
            tap += 1
    dw = jnp.maximum(acc + b2_ref[...], 0.0)          # (Ch, M)

    # ---- conv_out: 1x1 conv (BN scale folded) + bias (+ fused residual) ----
    out = jnp.dot(w3_ref[...], dw, preferred_element_type=jnp.float32)
    out = out + b3_ref[...]
    if residual:
        out = out + x2d                               # stride==1, inc==outc
    o_ref[0] = out.astype(o_ref.dtype)


# ----------------------------------------------------------------------------
# Wrapper
# ----------------------------------------------------------------------------
def inverted_residual_forward(x_nchw, params, *, inc, outc, kernel_size,
                              stride, expand_ratio):
    assert stride in (1, 2)
    N, C, H, W = x_nchw.shape
    assert C == inc
    K = kernel_size
    pad = K // 2
    M = H * W
    hidden = params["hidden"]
    has_expand = expand_ratio != 1
    residual = (stride == 1) and (inc == outc)

    # NCHW -> (N, C, H*W): a pure reshape; the spatial axis lands on TPU lanes.
    x2d = x_nchw.reshape(N, inc, M).astype(jnp.float32)

    # Fold eval-mode BN scale into the conv weights (kernel epilogue: bias only).
    wd_eff = (params["wd"] * params["s2"][:, None, None]).reshape(hidden, K * K)
    w3_eff = params["w3"] * params["s3"][:, None]
    b2 = params["b2"].reshape(hidden, 1)
    b3 = params["b3"].reshape(outc, 1)

    # Precomputed depthwise boundary masks (zero-padding semantics), (K*K, M).
    rows = jnp.arange(M, dtype=jnp.int32) // W
    cols = jnp.arange(M, dtype=jnp.int32) % W
    mask_list = []
    for kh in range(K):
        for kw in range(K):
            dr, dc = kh - pad, kw - pad
            mask_list.append((rows + dr >= 0) & (rows + dr < H)
                             & (cols + dc >= 0) & (cols + dc < W))
    masks = jnp.stack(mask_list).astype(jnp.float32)

    args = [x2d]
    in_specs = [pl.BlockSpec((1, inc, M), lambda n: (n, 0, 0))]
    if has_expand:
        w1_eff = params["w1"] * params["s1"][:, None]
        b1 = params["b1"].reshape(hidden, 1)
        args += [w1_eff, b1]
        in_specs += [pl.BlockSpec((hidden, inc), lambda n: (0, 0)),
                     pl.BlockSpec((hidden, 1), lambda n: (0, 0))]
    args += [wd_eff, b2, w3_eff, b3, masks]
    in_specs += [pl.BlockSpec((hidden, K * K), lambda n: (0, 0)),
                 pl.BlockSpec((hidden, 1), lambda n: (0, 0)),
                 pl.BlockSpec((outc, hidden), lambda n: (0, 0)),
                 pl.BlockSpec((outc, 1), lambda n: (0, 0)),
                 pl.BlockSpec((K * K, M), lambda n: (0, 0))]

    flops = 2 * N * M * (K * K * hidden + hidden * outc
                         + (inc * hidden if has_expand else 0))
    bytes_accessed = 4 * (N * inc * M + N * outc * M + K * K * M
                          + hidden * (inc + K * K + 2) + outc * (hidden + 1))

    kernel = functools.partial(_fused_ir_kernel, K=K, H=H, W=W,
                               has_expand=has_expand, residual=residual)

    out_flat = pl.pallas_call(
        kernel,
        out_shape=jax.ShapeDtypeStruct((N, outc, M), jnp.float32),
        grid=(N,),
        in_specs=in_specs,
        out_specs=pl.BlockSpec((1, outc, M), lambda n: (n, 0, 0)),
        compiler_params=pltpu.CompilerParams(
            dimension_semantics=("parallel",)),
        cost_estimate=pl.CostEstimate(flops=int(flops), transcendentals=0,
                                      bytes_accessed=int(bytes_accessed)),
    )(*args)

    out = out_flat.reshape(N, outc, H, W)
    if stride == 2:
        # TODO(synk): stride-2 computes the stride-1 depthwise in VMEM and
        # subsamples here (all following ops are pointwise, so results match);
        # a halo-tiled strided kernel would avoid the extra in-VMEM work.
        out = out[:, :, ::2, ::2]
    return out


# ----------------------------------------------------------------------------
# Deterministic synthetic parameters (PyTorch layouts, eval-mode BN folded)
# ----------------------------------------------------------------------------
def _bn_fold(C, seed_off, eps=1e-5):
    idx = jnp.arange(C, dtype=jnp.float32)
    gamma = 1.0 + 0.01 * (idx + seed_off)
    beta = 0.02 * (idx - seed_off)
    mean = 0.03 * (idx + 0.5 * seed_off)
    var = 1.0 + 0.05 * idx
    scale = gamma / jnp.sqrt(var + eps)
    bias = beta - mean * scale
    return scale, bias


def make_params(inc, outc, kernel_size, expand_ratio, key):
    hidden = int(round(inc * expand_ratio))
    K = kernel_size
    k1, k2, k3 = jax.random.split(key, 3)
    # PyTorch layouts: conv_in (hidden, inc, 1, 1), conv_dw (hidden, 1, K, K),
    # conv_out (outc, hidden, 1, 1) -- squeezed here.
    w1 = 0.3 * jax.random.normal(k1, (hidden, inc), jnp.float32)
    wd = 0.3 * jax.random.normal(k2, (hidden, K, K), jnp.float32)
    w3 = 0.3 * jax.random.normal(k3, (outc, hidden), jnp.float32)
    s1, b1 = _bn_fold(hidden, 1.0)
    s2, b2 = _bn_fold(hidden, 2.0)
    s3, b3 = _bn_fold(outc, 3.0)
    return dict(w1=w1, wd=wd, w3=w3, s1=s1, b1=b1, s2=s2, b2=b2, s3=s3, b3=b3,
                hidden=hidden)


# ----------------------------------------------------------------------------
# Pure-JAX reference (unfolded BN, NCHW) for the correctness check
# ----------------------------------------------------------------------------
def reference_forward(x_nchw, params, *, inc, outc, kernel_size, stride,
                      expand_ratio):
    K = kernel_size
    pad = K // 2
    residual = (stride == 1) and (inc == outc)
    x = x_nchw.astype(jnp.float32)

    if expand_ratio != 1:
        h = jnp.einsum("nchw,oc->nohw", x, params["w1"])
        h = h * params["s1"][None, :, None, None] + params["b1"][None, :, None, None]
        h = jnp.maximum(h, 0.0)
    else:
        h = x

    N, C, H, W = h.shape
    hp = jnp.pad(h, ((0, 0), (0, 0), (pad, pad), (pad, pad)))
    Ho = (H + 2 * pad - K) // stride + 1
    Wo = (W + 2 * pad - K) // stride + 1
    acc = jnp.zeros((N, C, Ho, Wo), jnp.float32)
    for kh in range(K):
        for kw in range(K):
            patch = hp[:, :, kh:kh + (Ho - 1) * stride + 1:stride,
                       kw:kw + (Wo - 1) * stride + 1:stride]
            acc = acc + patch * params["wd"][None, :, kh, kw, None, None]
    h = acc * params["s2"][None, :, None, None] + params["b2"][None, :, None, None]
    h = jnp.maximum(h, 0.0)

    y = jnp.einsum("nchw,oc->nohw", h, params["w3"])
    y = y * params["s3"][None, :, None, None] + params["b3"][None, :, None, None]
    if residual:
        y = y + x
    return y


if __name__ == "__main__":
    N, H, W = 2, 16, 16
    key = jax.random.PRNGKey(0)

    configs = [
        dict(inc=4, outc=4, kernel_size=3, stride=1, expand_ratio=2),  # residual
        dict(inc=4, outc=4, kernel_size=3, stride=2, expand_ratio=2),  # downsample
        dict(inc=4, outc=4, kernel_size=3, stride=1, expand_ratio=1),  # no expand
    ]
    for cfg in configs:
        key, kx, kp = jax.random.split(key, 3)
        x = jax.random.normal(kx, (N, cfg["inc"], H, W), dtype=jnp.float32)
        params = make_params(cfg["inc"], cfg["outc"], cfg["kernel_size"],
                             cfg["expand_ratio"], kp)

        out = jax.block_until_ready(
            inverted_residual_forward(x, params, **cfg))
        ref = jax.block_until_ready(reference_forward(x, params, **cfg))

        pad = cfg["kernel_size"] // 2
        Ho = (H + 2 * pad - cfg["kernel_size"]) // cfg["stride"] + 1
        Wo = (W + 2 * pad - cfg["kernel_size"]) // cfg["stride"] + 1
        assert out.shape == (N, cfg["outc"], Ho, Wo), out.shape
        err = float(jnp.max(jnp.abs(out - ref)))
        assert jnp.allclose(out, ref, rtol=1e-3, atol=1e-3), err

    print("KERNEL_OK")
</pallas_src>

<mosaic_0001>
module attributes {stable_mosaic.version = 11 : i64} {
  func.func @_fused_ir_kernel(%arg0: i32, %arg1: memref<1x4x256xf32, #tpu.memory_space<vmem>>, %arg2: memref<8x4xf32, #tpu.memory_space<vmem>>, %arg3: memref<8x1xf32, #tpu.memory_space<vmem>>, %arg4: memref<8x9xf32, #tpu.memory_space<vmem>>, %arg5: memref<8x1xf32, #tpu.memory_space<vmem>>, %arg6: memref<4x8xf32, #tpu.memory_space<vmem>>, %arg7: memref<4x1xf32, #tpu.memory_space<vmem>>, %arg8: memref<9x256xf32, #tpu.memory_space<vmem>>, %arg9: memref<1x4x256xf32, #tpu.memory_space<vmem>>) attributes {dimension_semantics = [#tpu.dimension_semantics<parallel>], iteration_bounds = array<i64: 2>, scalar_prefetch = 0 : i64, scratch_operands = 0 : i64, tpu.core_type = #tpu.core_type<tc>, window_params = [{transform_indices = @transform_0, window_bounds = array<i64: 1, 4, 256>}, {pipeline_mode = #tpu.pipeline_mode<synchronous>, transform_indices = @transform_1, window_bounds = array<i64: 8, 4>}, {pipeline_mode = #tpu.pipeline_mode<synchronous>, transform_indices = @transform_2, window_bounds = array<i64: 8, 1>}, {pipeline_mode = #tpu.pipeline_mode<synchronous>, transform_indices = @transform_3, window_bounds = array<i64: 8, 9>}, {pipeline_mode = #tpu.pipeline_mode<synchronous>, transform_indices = @transform_4, window_bounds = array<i64: 8, 1>}, {pipeline_mode = #tpu.pipeline_mode<synchronous>, transform_indices = @transform_5, window_bounds = array<i64: 4, 8>}, {pipeline_mode = #tpu.pipeline_mode<synchronous>, transform_indices = @transform_6, window_bounds = array<i64: 4, 1>}, {pipeline_mode = #tpu.pipeline_mode<synchronous>, transform_indices = @transform_7, window_bounds = array<i64: 9, 256>}, {transform_indices = @transform_8, window_bounds = array<i64: 1, 4, 256>}]} {
    %c0 = arith.constant 0 : index
    %c0_0 = arith.constant 0 : index
    %c0_1 = arith.constant 0 : index
    %0 = vector.load %arg1[%c0, %c0_0, %c0_1] : memref<1x4x256xf32, #tpu.memory_space<vmem>>, vector<1x4x256xf32>
    %1 = vector.shape_cast %0 : vector<1x4x256xf32> to vector<4x256xf32>
    %c0_2 = arith.constant 0 : index
    %c0_3 = arith.constant 0 : index
    %2 = vector.load %arg2[%c0_2, %c0_3] : memref<8x4xf32, #tpu.memory_space<vmem>>, vector<8x4xf32>
    %cst = arith.constant dense<0.000000e+00> : vector<8x256xf32>
    %3 = tpu.matmul %2, %1, %cst {dimension_numbers = #tpu.dot_dimension_numbers<[1], [0], [0], [1], [0, 0, 1, 1], [], []>} : vector<8x4xf32>, vector<4x256xf32>, vector<8x256xf32> -> vector<8x256xf32>
    %c0_4 = arith.constant 0 : index
    %c0_5 = arith.constant 0 : index
    %4 = vector.load %arg3[%c0_4, %c0_5] : memref<8x1xf32, #tpu.memory_space<vmem>>, vector<8x1xf32>
    %5 = vector.broadcast %4 : vector<8x1xf32> to vector<8x256xf32>
    %6 = arith.addf %3, %5 : vector<8x256xf32>
    %cst_6 = arith.constant 0.000000e+00 : f32
    %7 = vector.broadcast %cst_6 : f32 to vector<8x256xf32>
    %8 = arith.maximumf %6, %7 : vector<8x256xf32>
    %c0_7 = arith.constant 0 : index
    %c0_8 = arith.constant 0 : index
    %9 = vector.load %arg4[%c0_7, %c0_8] : memref<8x9xf32, #tpu.memory_space<vmem>>, vector<8x9xf32>
    %c0_9 = arith.constant 0 : index
    %c0_10 = arith.constant 0 : index
    %10 = vector.load %arg8[%c0_9, %c0_10] : memref<9x256xf32, #tpu.memory_space<vmem>>, vector<9x256xf32>
    %11 = tpu.concatenate %8, %8 in 1 : vector<8x256xf32>, vector<8x256xf32> -> vector<8x512xf32>
    %cst_11 = arith.constant 0.000000e+00 : f32
    %12 = vector.broadcast %cst_11 : f32 to vector<8x256xf32>
    %13 = vector.extract_strided_slice %11 {offsets = [0, 239], sizes = [8, 256], strides = [1, 1]} : vector<8x512xf32> to vector<8x256xf32>
    %14 = vector.extract_strided_slice %10 {offsets = [0, 0], sizes = [1, 256], strides = [1, 1]} : vector<9x256xf32> to vector<1x256xf32>
    %15 = vector.broadcast %14 : vector<1x256xf32> to vector<8x256xf32>
    %16 = arith.mulf %13, %15 : vector<8x256xf32>
    %17 = vector.extract_strided_slice %9 {offsets = [0, 0], sizes = [8, 1], strides = [1, 1]} : vector<8x9xf32> to vector<8x1xf32>
    %18 = vector.broadcast %17 : vector<8x1xf32> to vector<8x256xf32>
    %19 = arith.mulf %16, %18 : vector<8x256xf32>
    %20 = arith.addf %12, %19 : vector<8x256xf32>
    %21 = vector.extract_strided_slice %11 {offsets = [0, 240], sizes = [8, 256], strides = [1, 1]} : vector<8x512xf32> to vector<8x256xf32>
    %22 = vector.extract_strided_slice %10 {offsets = [1, 0], sizes = [1, 256], strides = [1, 1]} : vector<9x256xf32> to vector<1x256xf32>
    %23 = vector.broadcast %22 : vector<1x256xf32> to vector<8x256xf32>
    %24 = arith.mulf %21, %23 : vector<8x256xf32>
    %25 = vector.extract_strided_slice %9 {offsets = [0, 1], sizes = [8, 1], strides = [1, 1]} : vector<8x9xf32> to vector<8x1xf32>
    %26 = vector.broadcast %25 : vector<8x1xf32> to vector<8x256xf32>
    %27 = arith.mulf %24, %26 : vector<8x256xf32>
    %28 = arith.addf %20, %27 : vector<8x256xf32>
    %29 = vector.extract_strided_slice %11 {offsets = [0, 241], sizes = [8, 256], strides = [1, 1]} : vector<8x512xf32> to vector<8x256xf32>
    %30 = vector.extract_strided_slice %10 {offsets = [2, 0], sizes = [1, 256], strides = [1, 1]} : vector<9x256xf32> to vector<1x256xf32>
    %31 = vector.broadcast %30 : vector<1x256xf32> to vector<8x256xf32>
    %32 = arith.mulf %29, %31 : vector<8x256xf32>
    %33 = vector.extract_strided_slice %9 {offsets = [0, 2], sizes = [8, 1], strides = [1, 1]} : vector<8x9xf32> to vector<8x1xf32>
    %34 = vector.broadcast %33 : vector<8x1xf32> to vector<8x256xf32>
    %35 = arith.mulf %32, %34 : vector<8x256xf32>
    %36 = arith.addf %28, %35 : vector<8x256xf32>
    %37 = vector.extract_strided_slice %11 {offsets = [0, 255], sizes = [8, 256], strides = [1, 1]} : vector<8x512xf32> to vector<8x256xf32>
    %38 = vector.extract_strided_slice %10 {offsets = [3, 0], sizes = [1, 256], strides = [1, 1]} : vector<9x256xf32> to vector<1x256xf32>
    %39 = vector.broadcast %38 : vector<1x256xf32> to vector<8x256xf32>
    %40 = arith.mulf %37, %39 : vector<8x256xf32>
    %41 = vector.extract_strided_slice %9 {offsets = [0, 3], sizes = [8, 1], strides = [1, 1]} : vector<8x9xf32> to vector<8x1xf32>
    %42 = vector.broadcast %41 : vector<8x1xf32> to vector<8x256xf32>
    %43 = arith.mulf %40, %42 : vector<8x256xf32>
    %44 = arith.addf %36, %43 : vector<8x256xf32>
    %45 = vector.extract_strided_slice %10 {offsets = [4, 0], sizes = [1, 256], strides = [1, 1]} : vector<9x256xf32> to vector<1x256xf32>
    %46 = vector.broadcast %45 : vector<1x256xf32> to vector<8x256xf32>
    %47 = arith.mulf %8, %46 : vector<8x256xf32>
    %48 = vector.extract_strided_slice %9 {offsets = [0, 4], sizes = [8, 1], strides = [1, 1]} : vector<8x9xf32> to vector<8x1xf32>
    %49 = vector.broadcast %48 : vector<8x1xf32> to vector<8x256xf32>
    %50 = arith.mulf %47, %49 : vector<8x256xf32>
    %51 = arith.addf %44, %50 : vector<8x256xf32>
    %52 = vector.extract_strided_slice %11 {offsets = [0, 1], sizes = [8, 256], strides = [1, 1]} : vector<8x512xf32> to vector<8x256xf32>
    %53 = vector.extract_strided_slice %10 {offsets = [5, 0], sizes = [1, 256], strides = [1, 1]} : vector<9x256xf32> to vector<1x256xf32>
    %54 = vector.broadcast %53 : vector<1x256xf32> to vector<8x256xf32>
    %55 = arith.mulf %52, %54 : vector<8x256xf32>
    %56 = vector.extract_strided_slice %9 {offsets = [0, 5], sizes = [8, 1], strides = [1, 1]} : vector<8x9xf32> to vector<8x1xf32>
    %57 = vector.broadcast %56 : vector<8x1xf32> to vector<8x256xf32>
    %58 = arith.mulf %55, %57 : vector<8x256xf32>
    %59 = arith.addf %51, %58 : vector<8x256xf32>
    %60 = vector.extract_strided_slice %11 {offsets = [0, 15], sizes = [8, 256], strides = [1, 1]} : vector<8x512xf32> to vector<8x256xf32>
    %61 = vector.extract_strided_slice %10 {offsets = [6, 0], sizes = [1, 256], strides = [1, 1]} : vector<9x256xf32> to vector<1x256xf32>
    %62 = vector.broadcast %61 : vector<1x256xf32> to vector<8x256xf32>
    %63 = arith.mulf %60, %62 : vector<8x256xf32>
    %64 = vector.extract_strided_slice %9 {offsets = [0, 6], sizes = [8, 1], strides = [1, 1]} : vector<8x9xf32> to vector<8x1xf32>
    %65 = vector.broadcast %64 : vector<8x1xf32> to vector<8x256xf32>
    %66 = arith.mulf %63, %65 : vector<8x256xf32>
    %67 = arith.addf %59, %66 : vector<8x256xf32>
    %68 = vector.extract_strided_slice %11 {offsets = [0, 16], sizes = [8, 256], strides = [1, 1]} : vector<8x512xf32> to vector<8x256xf32>
    %69 = vector.extract_strided_slice %10 {offsets = [7, 0], sizes = [1, 256], strides = [1, 1]} : vector<9x256xf32> to vector<1x256xf32>
    %70 = vector.broadcast %69 : vector<1x256xf32> to vector<8x256xf32>
    %71 = arith.mulf %68, %70 : vector<8x256xf32>
    %72 = vector.extract_strided_slice %9 {offsets = [0, 7], sizes = [8, 1], strides = [1, 1]} : vector<8x9xf32> to vector<8x1xf32>
    %73 = vector.broadcast %72 : vector<8x1xf32> to vector<8x256xf32>
    %74 = arith.mulf %71, %73 : vector<8x256xf32>
    %75 = arith.addf %67, %74 : vector<8x256xf32>
    %76 = vector.extract_strided_slice %11 {offsets = [0, 17], sizes = [8, 256], strides = [1, 1]} : vector<8x512xf32> to vector<8x256xf32>
    %77 = vector.extract_strided_slice %10 {offsets = [8, 0], sizes = [1, 256], strides = [1, 1]} : vector<9x256xf32> to vector<1x256xf32>
    %78 = vector.broadcast %77 : vector<1x256xf32> to vector<8x256xf32>
    %79 = arith.mulf %76, %78 : vector<8x256xf32>
    %80 = vector.extract_strided_slice %9 {offsets = [0, 8], sizes = [8, 1], strides = [1, 1]} : vector<8x9xf32> to vector<8x1xf32>
    %81 = vector.broadcast %80 : vector<8x1xf32> to vector<8x256xf32>
    %82 = arith.mulf %79, %81 : vector<8x256xf32>
    %83 = arith.addf %75, %82 : vector<8x256xf32>
    %c0_12 = arith.constant 0 : index
    %c0_13 = arith.constant 0 : index
    %84 = vector.load %arg5[%c0_12, %c0_13] : memref<8x1xf32, #tpu.memory_space<vmem>>, vector<8x1xf32>
    %85 = vector.broadcast %84 : vector<8x1xf32> to vector<8x256xf32>
    %86 = arith.addf %83, %85 : vector<8x256xf32>
    %cst_14 = arith.constant 0.000000e+00 : f32
    %87 = vector.broadcast %cst_14 : f32 to vector<8x256xf32>
    %88 = arith.maximumf %86, %87 : vector<8x256xf32>
    %c0_15 = arith.constant 0 : index
    %c0_16 = arith.constant 0 : index
    %89 = vector.load %arg6[%c0_15, %c0_16] : memref<4x8xf32, #tpu.memory_space<vmem>>, vector<4x8xf32>
    %cst_17 = arith.constant dense<0.000000e+00> : vector<4x256xf32>
    %90 = tpu.matmul %89, %88, %cst_17 {dimension_numbers = #tpu.dot_dimension_numbers<[1], [0], [0], [1], [0, 0, 1, 1], [], []>} : vector<4x8xf32>, vector<8x256xf32>, vector<4x256xf32> -> vector<4x256xf32>
    %c0_18 = arith.constant 0 : index
    %c0_19 = arith.constant 0 : index
    %91 = vector.load %arg7[%c0_18, %c0_19] : memref<4x1xf32, #tpu.memory_space<vmem>>, vector<4x1xf32>
    %92 = vector.broadcast %91 : vector<4x1xf32> to vector<4x256xf32>
    %93 = arith.addf %90, %92 : vector<4x256xf32>
    %94 = arith.addf %93, %1 : vector<4x256xf32>
    %c0_20 = arith.constant 0 : index
    %c0_21 = arith.constant 0 : index
    %c0_22 = arith.constant 0 : index
    %95 = vector.load %arg9[%c0_20, %c0_21, %c0_22] : memref<1x4x256xf32, #tpu.memory_space<vmem>>, vector<1x4x256xf32>
    %96 = vector.shape_cast %95 : vector<1x4x256xf32> to vector<4x256xf32>
    %97 = vector.shape_cast %94 : vector<4x256xf32> to vector<1x4x256xf32>
    tpu.vector_store %arg9[%c0_20, %c0_21, %c0_22], %97 {strides = array<i32>} : memref<1x4x256xf32, #tpu.memory_space<vmem>>, vector<1x4x256xf32>,
    return
  }
  func.func @transform_0(%arg0: i32) -> (i32, i32, i32) {
    %c0_i32 = arith.constant 0 : i32
    %c0_i32_0 = arith.constant 0 : i32
    %c0_i32_1 = arith.constant 0 : i32
    return %arg0, %c0_i32, %c0_i32_0 : i32, i32, i32
  }
  func.func @transform_1(%arg0: i32) -> (i32, i32) {
    %c0_i32 = arith.constant 0 : i32
    %c0_i32_0 = arith.constant 0 : i32
    %c0_i32_1 = arith.constant 0 : i32
    return %c0_i32, %c0_i32_0 : i32, i32
  }
  func.func @transform_2(%arg0: i32) -> (i32, i32) {
    %c0_i32 = arith.constant 0 : i32
    %c0_i32_0 = arith.constant 0 : i32
    %c0_i32_1 = arith.constant 0 : i32
    return %c0_i32, %c0_i32_0 : i32, i32
  }
  func.func @transform_3(%arg0: i32) -> (i32, i32) {
    %c0_i32 = arith.constant 0 : i32
    %c0_i32_0 = arith.constant 0 : i32
    %c0_i32_1 = arith.constant 0 : i32
    return %c0_i32, %c0_i32_0 : i32, i32
  }
  func.func @transform_4(%arg0: i32) -> (i32, i32) {
    %c0_i32 = arith.constant 0 : i32
    %c0_i32_0 = arith.constant 0 : i32
    %c0_i32_1 = arith.constant 0 : i32
    return %c0_i32, %c0_i32_0 : i32, i32
  }
  func.func @transform_5(%arg0: i32) -> (i32, i32) {
    %c0_i32 = arith.constant 0 : i32
    %c0_i32_0 = arith.constant 0 : i32
    %c0_i32_1 = arith.constant 0 : i32
    return %c0_i32, %c0_i32_0 : i32, i32
  }
  func.func @transform_6(%arg0: i32) -> (i32, i32) {
    %c0_i32 = arith.constant 0 : i32
    %c0_i32_0 = arith.constant 0 : i32
    %c0_i32_1 = arith.constant 0 : i32
    return %c0_i32, %c0_i32_0 : i32, i32
  }
  func.func @transform_7(%arg0: i32) -> (i32, i32) {
    %c0_i32 = arith.constant 0 : i32
    %c0_i32_0 = arith.constant 0 : i32
    %c0_i32_1 = arith.constant 0 : i32
    return %c0_i32, %c0_i32_0 : i32, i32
  }
  func.func @transform_8(%arg0: i32) -> (i32, i32, i32) {
    %c0_i32 = arith.constant 0 : i32
    %c0_i32_0 = arith.constant 0 : i32
    %c0_i32_1 = arith.constant 0 : i32
    return %arg0, %c0_i32, %c0_i32_0 : i32, i32, i32
  }
}

</mosaic_0001>

<llo_original>
// kernel: tpu_custom_call.1
$region0: #{tpu_custom_call.1}
  #allocation0 [shape = 'u32[]', space=smem, size = 0x4, offset = 0x4, fixed_abs, tag = 'smem constant byte address 0x4 - core index']
  #allocation1 [shape = 'u32[144,128]{1,0:T(1,128)}', space=vmem, size = 0x12000, scoped, tag = 'internal scratch']
  %s0 = inlined_call_operand.vmem [shape: f32[2,4,256], index: 0, kind: input, shape index: {}]
  %s1 = inlined_call_operand.vmem [shape: f32[8,4], index: 1, kind: input, shape index: {}]
  %s2 = inlined_call_operand.vmem [shape: f32[8,1], index: 2, kind: input, shape index: {}]
  %s3 = inlined_call_operand.vmem [shape: f32[8,9], index: 3, kind: input, shape index: {}]
  %s4 = inlined_call_operand.vmem [shape: f32[8,1], index: 4, kind: input, shape index: {}]
  %s5 = inlined_call_operand.vmem [shape: f32[4,8], index: 5, kind: input, shape index: {}]
  %s6 = inlined_call_operand.vmem [shape: f32[4,1], index: 6, kind: input, shape index: {}]
  %s7 = inlined_call_operand.vmem [shape: f32[9,256], index: 7, kind: input, shape index: {}]
  %s8 = inlined_call_operand.hbm [shape: f32[2,4,256], index: 8, kind: output, shape index: {}]
  %s9 = sld [smem:[#allocation0]]
  $region65: #{tpu_custom_call.1} parent=0
    _
  %s11 = ssub.s32 1, %s9
  %s12 = scalar_select 0, %s11, %s9
  $region1: #{tpu_custom_call.1} parent=0
    #allocation2 [shape = 'u8[8192]{0}', space=vmem, size = 0x2000, scoped, tag = 'output window, operand 0']
    #allocation3 [shape = 's32[2]{0}', space=sflag, size = 0x8, scoped, tag = 'scoped memory for tpu_custom_call.1']
    %13 = vsyncpa [#allocation3], 0
    %s14 = scalar_lea.sflag [#allocation3], 1
    %15 = vsyncpa %s14, 0
    loop: start=0, step=1, limit=4
    $region2: #{tpu_custom_call.1} parent=1 // loop_pre_header
      _
    $region3: #{tpu_custom_call.1} parent=1 // loop_header
      %s17 = sphi 0, %s21
      %p18 = scmp.ge.s32.totalorder %s17, 4
      %s27 = sphi 0, %s29
      %s30 = sphi 0, %s27
      %s31 = sphi 0, %s30
      %s47 = sphi 0, %s31
      %s51 = sphi 0, %s51
      %s53 = sphi 0, %s51
      %s54 = sphi 0, %s53
      %s68 = sphi 0, %s54
      %s72 = sphi 0, %s72
      %s74 = sphi 0, %s72
      %s75 = sphi 0, %s74
      %s89 = sphi 0, %s75
      %s93 = sphi 0, %s93
      %s95 = sphi 0, %s93
      %s96 = sphi 0, %s95
      %s110 = sphi 0, %s96
      %s114 = sphi 0, %s114
      %s116 = sphi 0, %s114
      %s117 = sphi 0, %s116
      %s131 = sphi 0, %s117
      %s135 = sphi 0, %s135
      %s137 = sphi 0, %s135
      %s138 = sphi 0, %s137
      %s152 = sphi 0, %s138
      %s156 = sphi 0, %s156
      %s158 = sphi 0, %s156
      %s159 = sphi 0, %s158
      %s173 = sphi 0, %s159
      %s177 = sphi 0, %s177
      %s179 = sphi 0, %s177
      %s180 = sphi 0, %s179
      %s194 = sphi 0, %s180
      %s200 = sphi 0, %s202
      %s203 = sphi 0, %s200
      %s204 = sphi 0, %s203
      %s220 = sphi 0, %s204
    $region4: #{tpu_custom_call.1} parent=1 // loop_header_branch
      %20 = sbr.rel (%p18) target = $region8
    $region5: #{tpu_custom_call.1} parent=1 // loop_body
      %s22 = ssub.s32 %s17, 1
      %s23 = ssub.s32 %s17, 2
      %s24 = sadd.s32 %s17, 1
      %s25 = ssub.s32 %s17, %s24
      %p26 = scmp.eq.s32.totalorder %s25, 0
      %s28 = sadd.s32 %s27, 1
      %s29 = scalar_select %p26, %s27, %s28
      %p32 = pneg %p26
      %p33 = scmp.eq.s32.totalorder %s17, 1
      %p34 = por %p32, %p33
      %p35 = scmp.ne.s32.totalorder %s27, %s30
      %p36 = scmp.eq.s32.totalorder %s17, 0
      %p37 = por %p35, %p36
      %p38 = scmp.ne.s32.totalorder %s27, %s30
      %p39 = scmp.eq.s32.totalorder %s22, 1
      %p40 = por %p38, %p39
      %p41 = scmp.ne.s32.totalorder %s30, %s31
      %p42 = scmp.eq.s32.totalorder %s22, 0
      %p43 = por %p41, %p42
      %p44 = scmp.ne.s32.totalorder %s30, %s31
      %p45 = scmp.eq.s32.totalorder %s23, 1
      %p46 = por %p44, %p45
      %p48 = scmp.ne.s32.totalorder %s31, %s47
      %p49 = scmp.eq.s32.totalorder %s23, 0
      %p50 = por %p48, %p49
      %s52 = sadd.s32 %s51, 1
      %p55 = scmp.eq.s32.totalorder %s17, 1
      %p56 = scmp.ne.s32.totalorder %s51, %s53
      %p57 = scmp.eq.s32.totalorder %s17, 0
      %p58 = por %p56, %p57
      %p59 = scmp.ne.s32.totalorder %s51, %s53
      %p60 = scmp.eq.s32.totalorder %s22, 1
      %p61 = por %p59, %p60
      %p62 = scmp.ne.s32.totalorder %s53, %s54
      %p63 = scmp.eq.s32.totalorder %s22, 0
      %p64 = por %p62, %p63
      %p65 = scmp.ne.s32.totalorder %s53, %s54
      %p66 = scmp.eq.s32.totalorder %s23, 1
      %p67 = por %p65, %p66
      %p69 = scmp.ne.s32.totalorder %s54, %s68
      %p70 = scmp.eq.s32.totalorder %s23, 0
      %p71 = por %p69, %p70
      %s73 = sadd.s32 %s72, 1
      %p76 = scmp.eq.s32.totalorder %s17, 1
      %p77 = scmp.ne.s32.totalorder %s72, %s74
      %p78 = scmp.eq.s32.totalorder %s17, 0
      %p79 = por %p77, %p78
      %p80 = scmp.ne.s32.totalorder %s72, %s74
      %p81 = scmp.eq.s32.totalorder %s22, 1
      %p82 = por %p80, %p81
      %p83 = scmp.ne.s32.totalorder %s74, %s75
      %p84 = scmp.eq.s32.totalorder %s22, 0
      %p85 = por %p83, %p84
      %p86 = scmp.ne.s32.totalorder %s74, %s75
      %p87 = scmp.eq.s32.totalorder %s23, 1
      %p88 = por %p86, %p87
      %p90 = scmp.ne.s32.totalorder %s75, %s89
      %p91 = scmp.eq.s32.totalorder %s23, 0
      %p92 = por %p90, %p91
      %s94 = sadd.s32 %s93, 1
      %p97 = scmp.eq.s32.totalorder %s17, 1
      %p98 = scmp.ne.s32.totalorder %s93, %s95
      %p99 = scmp.eq.s32.totalorder %s17, 0
      %p100 = por %p98, %p99
      %p101 = scmp.ne.s32.totalorder %s93, %s95
      %p102 = scmp.eq.s32.totalorder %s22, 1
      %p103 = por %p101, %p102
      %p104 = scmp.ne.s32.totalorder %s95, %s96
      %p105 = scmp.eq.s32.totalorder %s22, 0
      %p106 = por %p104, %p105
      %p107 = scmp.ne.s32.totalorder %s95, %s96
      %p108 = scmp.eq.s32.totalorder %s23, 1
      %p109 = por %p107, %p108
      %p111 = scmp.ne.s32.totalorder %s96, %s110
      %p112 = scmp.eq.s32.totalorder %s23, 0
      %p113 = por %p111, %p112
      %s115 = sadd.s32 %s114, 1
      %p118 = scmp.eq.s32.totalorder %s17, 1
      %p119 = scmp.ne.s32.totalorder %s114, %s116
      %p120 = scmp.eq.s32.totalorder %s17, 0
      %p121 = por %p119, %p120
      %p122 = scmp.ne.s32.totalorder %s114, %s116
      %p123 = scmp.eq.s32.totalorder %s22, 1
      %p124 = por %p122, %p123
      %p125 = scmp.ne.s32.totalorder %s116, %s117
      %p126 = scmp.eq.s32.totalorder %s22, 0
      %p127 = por %p125, %p126
      %p128 = scmp.ne.s32.totalorder %s116, %s117
      %p129 = scmp.eq.s32.totalorder %s23, 1
      %p130 = por %p128, %p129
      %p132 = scmp.ne.s32.totalorder %s117, %s131
      %p133 = scmp.eq.s32.totalorder %s23, 0
      %p134 = por %p132, %p133
      %s136 = sadd.s32 %s135, 1
      %p139 = scmp.eq.s32.totalorder %s17, 1
      %p140 = scmp.ne.s32.totalorder %s135, %s137
      %p141 = scmp.eq.s32.totalorder %s17, 0
      %p142 = por %p140, %p141
      %p143 = scmp.ne.s32.totalorder %s135, %s137
      %p144 = scmp.eq.s32.totalorder %s22, 1
      %p145 = por %p143, %p144
      %p146 = scmp.ne.s32.totalorder %s137, %s138
      %p147 = scmp.eq.s32.totalorder %s22, 0
      %p148 = por %p146, %p147
      %p149 = scmp.ne.s32.totalorder %s137, %s138
      %p150 = scmp.eq.s32.totalorder %s23, 1
      %p151 = por %p149, %p150
      %p153 = scmp.ne.s32.totalorder %s138, %s152
      %p154 = scmp.eq.s32.totalorder %s23, 0
      %p155 = por %p153, %p154
      %s157 = sadd.s32 %s156, 1
      %p160 = scmp.eq.s32.totalorder %s17, 1
      %p161 = scmp.ne.s32.totalorder %s156, %s158
      %p162 = scmp.eq.s32.totalorder %s17, 0
      %p163 = por %p161, %p162
      %p164 = scmp.ne.s32.totalorder %s156, %s158
      %p165 = scmp.eq.s32.totalorder %s22, 1
      %p166 = por %p164, %p165
      %p167 = scmp.ne.s32.totalorder %s158, %s159
      %p168 = scmp.eq.s32.totalorder %s22, 0
      %p169 = por %p167, %p168
      %p170 = scmp.ne.s32.totalorder %s158, %s159
      %p171 = scmp.eq.s32.totalorder %s23, 1
      %p172 = por %p170, %p171
      %p174 = scmp.ne.s32.totalorder %s159, %s173
      %p175 = scmp.eq.s32.totalorder %s23, 0
      %p176 = por %p174, %p175
      %s178 = sadd.s32 %s177, 1
      %p181 = scmp.eq.s32.totalorder %s17, 1
      %p182 = scmp.ne.s32.totalorder %s177, %s179
      %p183 = scmp.eq.s32.totalorder %s17, 0
      %p184 = por %p182, %p183
      %p185 = scmp.ne.s32.totalorder %s177, %s179
      %p186 = scmp.eq.s32.totalorder %s22, 1
      %p187 = por %p185, %p186
      %p188 = scmp.ne.s32.totalorder %s179, %s180
      %p189 = scmp.eq.s32.totalorder %s22, 0
      %p190 = por %p188, %p189
      %p191 = scmp.ne.s32.totalorder %s179, %s180
      %p192 = scmp.eq.s32.totalorder %s23, 1
      %p193 = por %p191, %p192
      %p195 = scmp.ne.s32.totalorder %s180, %s194
      %p196 = scmp.eq.s32.totalorder %s23, 0
      %p197 = por %p195, %p196
      %s198 = ssub.s32 %s17, %s24
      %p199 = scmp.eq.s32.totalorder %s198, 0
      %s201 = sadd.s32 %s200, 1
      %s202 = scalar_select %p199, %s200, %s201
      %p205 = pneg %p199
      %p206 = scmp.eq.s32.totalorder %s17, 1
      %p207 = por %p205, %p206
      %p208 = scmp.ne.s32.totalorder %s200, %s203
      %p209 = scmp.eq.s32.totalorder %s17, 0
      %p210 = por %p208, %p209
      %p211 = scmp.ne.s32.totalorder %s200, %s203
      %p212 = scmp.eq.s32.totalorder %s22, 1
      %p213 = por %p211, %p212
      %p214 = scmp.ne.s32.totalorder %s203, %s204
      %p215 = scmp.eq.s32.totalorder %s22, 0
      %p216 = por %p214, %p215
      %p217 = scmp.ne.s32.totalorder %s203, %s204
      %p218 = scmp.eq.s32.totalorder %s23, 1
      %p219 = por %p217, %p218
      %p221 = scmp.ne.s32.totalorder %s204, %s220
      %p222 = scmp.eq.s32.totalorder %s23, 0
      %p223 = por %p221, %p222
      %p224 = scmp.le.s32.totalorder 1, %s17
      %p225 = scmp.lt.s32.totalorder %s17, 3
      %p226 = pnand %p224, %p225
      %p227 = pneg %p226
      // Predicated region
      $region9: #{tpu_custom_call.1} parent=5 // pred_check
        _
      $region10: #{tpu_custom_call.1} parent=5 // pred_check_branch
        %229 = sbr.rel (%p226) target = $region12
      $region11: #{tpu_custom_call.1} parent=5 // pred_region
        %s230 = ssub.s32 %s17, 1
        // Predicated region
        $region13: #{tpu_custom_call.1} parent=11 // pred_check
          %p231 = pneg %p64
        $region14: #{tpu_custom_call.1} parent=11 // pred_check_branch
          %233 = sbr.rel (%p231) target = $region16
        $region15: #{tpu_custom_call.1} parent=11 // pred_region
          _
        $region16: #{tpu_custom_call.1} parent=11 // pred_fallthru
          _
        // Predicated region
        $region17: #{tpu_custom_call.1} parent=11 // pred_check
          %p234 = pneg %p85
        $region18: #{tpu_custom_call.1} parent=11 // pred_check_branch
          %236 = sbr.rel (%p234) target = $region20
        $region19: #{tpu_custom_call.1} parent=11 // pred_region
          _
        $region20: #{tpu_custom_call.1} parent=11 // pred_fallthru
          _
        // Predicated region
        $region21: #{tpu_custom_call.1} parent=11 // pred_check
          %p237 = pneg %p106
        $region22: #{tpu_custom_call.1} parent=11 // pred_check_branch
          %239 = sbr.rel (%p237) target = $region24
        $region23: #{tpu_custom_call.1} parent=11 // pred_region
          _
        $region24: #{tpu_custom_call.1} parent=11 // pred_fallthru
          _
        // Predicated region
        $region25: #{tpu_custom_call.1} parent=11 // pred_check
          %p240 = pneg %p127
        $region26: #{tpu_custom_call.1} parent=11 // pred_check_branch
          %242 = sbr.rel (%p240) target = $region28
        $region27: #{tpu_custom_call.1} parent=11 // pred_region
          _
        $region28: #{tpu_custom_call.1} parent=11 // pred_fallthru
          _
        // Predicated region
        $region29: #{tpu_custom_call.1} parent=11 // pred_check
          %p243 = pneg %p148
        $region30: #{tpu_custom_call.1} parent=11 // pred_check_branch
          %245 = sbr.rel (%p243) target = $region32
        $region31: #{tpu_custom_call.1} parent=11 // pred_region
          _
        $region32: #{tpu_custom_call.1} parent=11 // pred_fallthru
          _
        // Predicated region
        $region33: #{tpu_custom_call.1} parent=11 // pred_check
          %p246 = pneg %p169
        $region34: #{tpu_custom_call.1} parent=11 // pred_check_branch
          %248 = sbr.rel (%p246) target = $region36
        $region35: #{tpu_custom_call.1} parent=11 // pred_region
          _
        $region36: #{tpu_custom_call.1} parent=11 // pred_fallthru
          _
        // Predicated region
        $region37: #{tpu_custom_call.1} parent=11 // pred_check
          %p249 = pneg %p190
        $region38: #{tpu_custom_call.1} parent=11 // pred_check_branch
          %251 = sbr.rel (%p249) target = $region40
        $region39: #{tpu_custom_call.1} parent=11 // pred_region
          _
        $region40: #{tpu_custom_call.1} parent=11 // pred_fallthru
          _
      $region12: #{tpu_custom_call.1} parent=5 // pred_fallthru
        _
      %p252 = scmp.lt.s32.totalorder %s17, 2
      // Predicated region
      $region41: #{tpu_custom_call.1} parent=5 // pred_check
        %p253 = pneg %p252
      $region42: #{tpu_custom_call.1} parent=5 // pred_check_branch
        %255 = sbr.rel (%p253) target = $region44
      $region43: #{tpu_custom_call.1} parent=5 // pred_region
        // Predicated region
        $region45: #{tpu_custom_call.1} parent=43 // pred_check
          %p256 = pneg %p37
        $region46: #{tpu_custom_call.1} parent=43 // pred_check_branch
          %258 = sbr.rel (%p256) target = $region48
        $region47: #{tpu_custom_call.1} parent=43 // pred_region
          %p259 = scmp.lt.s32.totalorder %s17, 1
          %s260 = scalar_select %p259, %s17, 1
          %s261 = smul.addr %s260, 2
          %s262 = smul.addr %s261, 4
          %s263 = scalar_lea.vmem %s0, %s262
        $region48: #{tpu_custom_call.1} parent=43 // pred_fallthru
          _
      $region44: #{tpu_custom_call.1} parent=5 // pred_fallthru
        _
      %p264 = scmp.le.s32.totalorder 1, %s17
      %p265 = scmp.lt.s32.totalorder %s17, 3
      %p266 = pnand %p264, %p265
      %p267 = pneg %p266
      // Predicated region
      $region49: #{tpu_custom_call.1} parent=5 // pred_check
        _
      $region50: #{tpu_custom_call.1} parent=5 // pred_check_branch
        %269 = sbr.rel (%p266) target = $region52
      $region51: #{tpu_custom_call.1} parent=5 // pred_region
        %s270 = ssub.s32 %s17, 1
        %p271 = scmp.lt.s32.totalorder %s22, 1
        %s272 = scalar_select %p271, %s22, 1
        %s273 = smul.addr %s272, 2
        %s274 = smul.addr %s273, 4
        %s275 = scalar_lea.vmem %s0, %s274
        %p276 = pneg %p43
        %p277 = pneg %p40
        %p278 = pneg %p64
        %p279 = pneg %p61
        %p280 = pneg %p85
        %p281 = pneg %p82
        %p282 = pneg %p106
        %p283 = pneg %p103
        %p284 = pneg %p127
        %p285 = pneg %p124
        %p286 = pneg %p148
        %p287 = pneg %p145
        %p288 = pneg %p169
        %p289 = pneg %p166
        %p290 = pneg %p190
        %p291 = pneg %p187
        %p292 = pneg %p216
        %p293 = pneg %p213
        %s294 = sand.u32 %s203, 1
        %s295 = scalar_lea.sflag [#allocation3], %s294
        %s296 = sand.u32 %s203, 1
        %s297 = smul.addr %s296, 8
        %s298 = scalar_lea.vmem [#allocation2], %s297
        %p299 = scmp.lt.s32.totalorder %s22, 1
        %s300 = scalar_select %p299, %s22, 1
        %s301 = smul.addr %s300, 2
        %s302 = smul.addr %s301, 4
        %s303 = scalar_lea.vmem %s0, %s302
        %v304 = vld [vmem:[%s303] sm:$0xff]
        %v305 = vld [vmem:[%s1] sm:$0xff]
        %v306 = vld [vmem:[%s2] sm:$0xff]
        %308 = vset.pattern.permute.xlu0 0
        %309 = vperm.xlu0 %308, %v306
        %v310 = vpop.permute.xlu0 %309
        %v313 = vcombine.high %v304, %v304
        %vm314 = vcmask 31744
        %v316 = vsel %vm314, %v305, 0
        %vm318 = vcmask 1043456
        %v319 = vsel %vm318, %v304, 0
        %v321 = vsel %vm318, %v313, 0
        %323 = vmatprep.subr.mxu0 %v321
        %324 = vmatpush1.msra.mxu0 %v319
        %325 = vmatprep.subr.mxu0 0.0
        %326 = vmatpush1.msra.mxu0 0.0
        %327 = vmatprep.subr.mxu0 0.0
        %328 = vmatpush1.msra.mxu0 0.0
        %329 = vmatprep.subr.mxu0 0.0
        %330 = vmatpush1.msra.mxu0 0.0
        %331 = vmatprep.subr.mxu0 0.0
        %332 = vmatpush1.msra.mxu0 0.0
        %333 = vmatprep.subr.mxu0 0.0
        %334 = vmatpush1.msra.mxu0 0.0
        %335 = vmatprep.subr.mxu0 0.0
        %336 = vmatpush1.msra.mxu0 0.0
        %337 = vmatprep.subr.mxu0 0.0
        %338 = vmatpush1.msra.mxu0 0.0
        %339 = vmatprep.subr.mxu0 0.0
        %340 = vmatpush1.msra.mxu0 0.0
        %341 = vmatprep.subr.mxu0 0.0
        %342 = vmatpush1.msra.mxu0 0.0
        %343 = vmatprep.subr.mxu0 0.0
        %344 = vmatpush1.msra.mxu0 0.0
        %345 = vmatprep.subr.mxu0 0.0
        %346 = vmatpush1.msra.mxu0 0.0
        %347 = vmatprep.subr.mxu0 0.0
        %348 = vmatpush1.msra.mxu0 0.0
        %349 = vmatprep.subr.mxu0 0.0
        %350 = vmatpush1.msra.mxu0 0.0
        %351 = vmatprep.subr.mxu0 0.0
        %352 = vmatpush1.msra.mxu0 0.0
        %353 = vmatprep.subr.mxu0 0.0
        %354 = vmatpush1.msra.mxu0 0.0
        %355 = vmatprep.subr.mxu0 0.0
        %356 = vmatpush1.msra.mxu0 0.0
        %357 = vmatprep.subr.mxu0 0.0
        %358 = vmatpush1.msra.mxu0 0.0
        %359 = vmatprep.subr.mxu0 0.0
        %360 = vmatpush1.msra.mxu0 0.0
        %361 = vmatprep.subr.mxu0 0.0
        %362 = vmatpush1.msra.mxu0 0.0
        %363 = vmatprep.subr.mxu0 0.0
        %364 = vmatpush1.msra.mxu0 0.0
        %365 = vmatprep.subr.mxu0 0.0
        %366 = vmatpush1.msra.mxu0 0.0
        %367 = vmatprep.subr.mxu0 0.0
        %368 = vmatpush1.msra.mxu0 0.0
        %369 = vmatprep.subr.mxu0 0.0
        %370 = vmatpush1.msra.mxu0 0.0
        %371 = vmatprep.subr.mxu0 0.0
        %372 = vmatpush1.msra.mxu0 0.0
        %373 = vmatprep.subr.mxu0 0.0
        %374 = vmatpush1.msra.mxu0 0.0
        %375 = vmatprep.subr.mxu0 0.0
        %376 = vmatpush1.msra.mxu0 0.0
        %377 = vmatprep.subr.mxu0 0.0
        %378 = vmatpush1.msra.mxu0 0.0
        %379 = vmatprep.subr.mxu0 0.0
        %380 = vmatpush1.msra.mxu0 0.0
        %381 = vmatprep.subr.mxu0 0.0
        %382 = vmatpush1.msra.mxu0 0.0
        %383 = vmatprep.subr.mxu0 0.0
        %384 = vmatpush1.msra.mxu0 0.0
        %385 = vmatprep.subr.mxu0 0.0
        %386 = vmatpush1.msra.mxu0 0.0
        %387 = vmatprep.mubr.f32.mxu0 0.0
        %388 = vmatmul.mubr.f32.gmra.mrb[0].mxu0 %v316
        %v389 = vpop.f32.mrb[0].mxu0
        %v390 = vadd.f32 %v310, %v389
        %v391 = vpop.f32.mrb[0].mxu0
        %v392 = vadd.f32 %v310, %v391
        %393 = vdwg.mxu0
        %v394 = vmax.f32 %v390, 0.0
        %v395 = vmax.f32 %v392, 0.0
        %v396 = vld [vmem:[%s3] sm:$0xff]
        %v397 = vld [vmem:[%s7] sm:$0xff]
        %v398 = vld [vmem:[%s7 + $0x8] sm:$0xff]
        %v399 = vld [vmem:[%s7 + $0x10] sm:$0x1]
        %v400 = vld [vmem:[%s7 + $0x18] sm:$0x1]
        %v401 = vlaneseq
        %v402 = vshrl.u32 %v401, 7
        %v403 = vsub.s32 0, %v402
        %v404 = vrot.slane %v397, %v403
        %v405 = vlaneseq
        %v406 = vshrl.u32 %v405, 7
        %v407 = vsub.s32 0, %v406
        %v408 = vrot.slane %v398, %v407
        %411 = vrot.lane.b32.xlu0 %v404, 111
        %v412 = vpop.permute.xlu0 %411
        %413 = vrot.lane.b32.xlu0 %v408, 111
        %v414 = vpop.permute.xlu0 %413
        %vm415 = vcmask 908288
        %v416 = vsel %vm415, %v412, %v414
        %v420 = vmul.f32 %v395, %v412
        %v421 = vmul.f32 %v394, %v416
        %v422 = vmul.f32 %v395, %v414
        %424 = vset.pattern.permute.xlu0 0
        %425 = vperm.xlu0 %424, %v396
        %v426 = vpop.permute.xlu0 %425
        %v428 = vmul.f32 %v420, %v426
        %v429 = vmul.f32 %v421, %v426
        %v430 = vmul.f32 %v422, %v426
        %v431 = vadd.f32 %v428, 0.0
        %v432 = vadd.f32 %v429, 0.0
        %v433 = vadd.f32 %v430, 0.0
        %v434 = vlaneseq
        %v435 = vshrl.u32 %v434, 7
        %v436 = vsub.s32 1, %v435
        %v437 = vrot.slane %v397, %v436
        %v438 = vlaneseq
        %v439 = vshrl.u32 %v438, 7
        %v440 = vsub.s32 1, %v439
        %v441 = vrot.slane %v398, %v440
        %444 = vrot.lane.b32.xlu0 %v437, 112
        %v445 = vpop.permute.xlu0 %444
        %446 = vrot.lane.b32.xlu0 %v441, 112
        %v447 = vpop.permute.xlu0 %446
        %vm448 = vcmask 916480
        %v449 = vsel %vm448, %v445, %v447
        %v453 = vmul.f32 %v395, %v445
        %v454 = vmul.f32 %v394, %v449
        %v455 = vmul.f32 %v395, %v447
        %456 = vset.pattern.permute.xlu0 1
        %457 = vperm.xlu0 %456, %v396
        %v458 = vpop.permute.xlu0 %457
        %v460 = vmul.f32 %v453, %v458
        %v461 = vmul.f32 %v454, %v458
        %v462 = vmul.f32 %v455, %v458
        %466 = vrot.lane.b32.xlu0 %v460, 127
        %v467 = vpop.permute.xlu0 %466
        %468 = vrot.lane.b32.xlu0 %v461, 127
        %v469 = vpop.permute.xlu0 %468
        %470 = vrot.lane.b32.xlu0 %v462, 127
        %v471 = vpop.permute.xlu0 %470
        %vm472 = vcmask 1039360
        %v473 = vsel %vm472, %v467, %v469
        %v474 = vsel %vm472, %v469, %v471
        %v478 = vadd.f32 %v431, %v473
        %v479 = vadd.f32 %v432, %v474
        %v480 = vadd.f32 %v433, %v471
        %v481 = vlaneseq
        %v482 = vshrl.u32 %v481, 7
        %v483 = vsub.s32 2, %v482
        %v484 = vrot.slane %v397, %v483
        %v485 = vlaneseq
        %v486 = vshrl.u32 %v485, 7
        %v487 = vsub.s32 2, %v486
        %v488 = vrot.slane %v398, %v487
        %491 = vrot.lane.b32.xlu0 %v484, 113
        %v492 = vpop.permute.xlu0 %491
        %493 = vrot.lane.b32.xlu0 %v488, 113
        %v494 = vpop.permute.xlu0 %493
        %vm495 = vcmask 924672
        %v496 = vsel %vm495, %v492, %v494
        %v500 = vmul.f32 %v395, %v492
        %v501 = vmul.f32 %v394, %v496
        %v502 = vmul.f32 %v395, %v494
        %503 = vset.pattern.permute.xlu0 2
        %504 = vperm.xlu0 %503, %v396
        %v505 = vpop.permute.xlu0 %504
        %v507 = vmul.f32 %v500, %v505
        %v508 = vmul.f32 %v501, %v505
        %v509 = vmul.f32 %v502, %v505
        %513 = vrot.lane.b32.xlu0 %v507, 126
        %v514 = vpop.permute.xlu0 %513
        %515 = vrot.lane.b32.xlu0 %v508, 126
        %v516 = vpop.permute.xlu0 %515
        %517 = vrot.lane.b32.xlu0 %v509, 126
        %v518 = vpop.permute.xlu0 %517
        %vm519 = vcmask 1031168
        %v520 = vsel %vm519, %v514, %v516
        %v521 = vsel %vm519, %v516, %v518
        %v525 = vadd.f32 %v478, %v520
        %v526 = vadd.f32 %v479, %v521
        %v527 = vadd.f32 %v480, %v518
        %v528 = vlaneseq
        %v529 = vshrl.u32 %v528, 7
        %v530 = vsub.s32 3, %v529
        %v531 = vrot.slane %v397, %v530
        %v532 = vlaneseq
        %v533 = vshrl.u32 %v532, 7
        %v534 = vsub.s32 3, %v533
        %v535 = vrot.slane %v398, %v534
        %538 = vrot.lane.b32.xlu0 %v531, 127
        %v539 = vpop.permute.xlu0 %538
        %540 = vrot.lane.b32.xlu0 %v535, 127
        %v541 = vpop.permute.xlu0 %540
        %v542 = vsel %vm472, %v539, %v541
        %v546 = vmul.f32 %v395, %v539
        %v547 = vmul.f32 %v394, %v542
        %v548 = vmul.f32 %v395, %v541
        %549 = vset.pattern.permute.xlu0 3
        %550 = vperm.xlu0 %549, %v396
        %v551 = vpop.permute.xlu0 %550
        %v553 = vmul.f32 %v546, %v551
        %v554 = vmul.f32 %v547, %v551
        %v555 = vmul.f32 %v548, %v551
        %559 = vrot.lane.b32.xlu0 %v553, 112
        %v560 = vpop.permute.xlu0 %559
        %561 = vrot.lane.b32.xlu0 %v554, 112
        %v562 = vpop.permute.xlu0 %561
        %563 = vrot.lane.b32.xlu0 %v555, 112
        %v564 = vpop.permute.xlu0 %563
        %v565 = vsel %vm448, %v560, %v562
        %v566 = vsel %vm448, %v562, %v564
        %v570 = vadd.f32 %v525, %v565
        %v571 = vadd.f32 %v526, %v566
        %v572 = vadd.f32 %v527, %v564
        %v573 = vlaneseq
        %v574 = vshrl.u32 %v573, 7
        %v575 = vsub.s32 4, %v574
        %v576 = vrot.slane %v397, %v575
        %v577 = vlaneseq
        %v578 = vshrl.u32 %v577, 7
        %v579 = vsub.s32 4, %v578
        %v580 = vrot.slane %v398, %v579
        %v581 = vmul.f32 %v394, %v576
        %v582 = vmul.f32 %v395, %v580
        %583 = vset.pattern.permute.xlu0 4
        %584 = vperm.xlu0 %583, %v396
        %v585 = vpop.permute.xlu0 %584
        %v587 = vmul.f32 %v581, %v585
        %v588 = vmul.f32 %v582, %v585
        %591 = vrot.lane.b32.xlu0 %v587, 111
        %v592 = vpop.permute.xlu0 %591
        %593 = vrot.lane.b32.xlu0 %v588, 111
        %v594 = vpop.permute.xlu0 %593
        %v595 = vsel %vm415, %v592, %v594
        %v599 = vadd.f32 %v570, %v592
        %v600 = vadd.f32 %v571, %v595
        %v601 = vadd.f32 %v572, %v594
        %v602 = vlaneseq
        %v603 = vshrl.u32 %v602, 7
        %v604 = vsub.s32 5, %v603
        %v605 = vrot.slane %v397, %v604
        %v606 = vlaneseq
        %v607 = vshrl.u32 %v606, 7
        %v608 = vsub.s32 5, %v607
        %v609 = vrot.slane %v398, %v608
        %612 = vrot.lane.b32.xlu0 %v605, 1
        %v613 = vpop.permute.xlu0 %612
        %614 = vrot.lane.b32.xlu0 %v609, 1
        %v615 = vpop.permute.xlu0 %614
        %vm616 = vcmask 7168
        %v617 = vsel %vm616, %v613, %v615
        %v621 = vmul.f32 %v394, %v613
        %v622 = vmul.f32 %v395, %v617
        %v623 = vmul.f32 %v394, %v615
        %624 = vset.pattern.permute.xlu0 5
        %625 = vperm.xlu0 %624, %v396
        %v626 = vpop.permute.xlu0 %625
        %v628 = vmul.f32 %v621, %v626
        %v629 = vmul.f32 %v622, %v626
        %v630 = vmul.f32 %v623, %v626
        %634 = vrot.lane.b32.xlu0 %v628, 110
        %v635 = vpop.permute.xlu0 %634
        %636 = vrot.lane.b32.xlu0 %v629, 110
        %v637 = vpop.permute.xlu0 %636
        %638 = vrot.lane.b32.xlu0 %v630, 110
        %v639 = vpop.permute.xlu0 %638
        %vm640 = vcmask 900096
        %v641 = vsel %vm640, %v635, %v637
        %v642 = vsel %vm640, %v637, %v639
        %v646 = vadd.f32 %v599, %v635
        %v647 = vadd.f32 %v600, %v641
        %v648 = vadd.f32 %v601, %v642
        %v649 = vlaneseq
        %v650 = vshrl.u32 %v649, 7
        %v651 = vsub.s32 6, %v650
        %v652 = vrot.slane %v397, %v651
        %v653 = vlaneseq
        %v654 = vshrl.u32 %v653, 7
        %v655 = vsub.s32 6, %v654
        %v656 = vrot.slane %v398, %v655
        %659 = vrot.lane.b32.xlu0 %v652, 15
        %v660 = vpop.permute.xlu0 %659
        %661 = vrot.lane.b32.xlu0 %v656, 15
        %v662 = vpop.permute.xlu0 %661
        %vm663 = vcmask 121856
        %v664 = vsel %vm663, %v660, %v662
        %v668 = vmul.f32 %v394, %v660
        %v669 = vmul.f32 %v395, %v664
        %v670 = vmul.f32 %v394, %v662
        %671 = vset.pattern.permute.xlu0 6
        %672 = vperm.xlu0 %671, %v396
        %v673 = vpop.permute.xlu0 %672
        %v675 = vmul.f32 %v668, %v673
        %v676 = vmul.f32 %v669, %v673
        %v677 = vmul.f32 %v670, %v673
        %681 = vrot.lane.b32.xlu0 %v675, 96
        %v682 = vpop.permute.xlu0 %681
        %683 = vrot.lane.b32.xlu0 %v676, 96
        %v684 = vpop.permute.xlu0 %683
        %685 = vrot.lane.b32.xlu0 %v677, 96
        %v686 = vpop.permute.xlu0 %685
        %vm687 = vcmask 785408
        %v688 = vsel %vm687, %v682, %v684
        %v689 = vsel %vm687, %v684, %v686
        %v693 = vadd.f32 %v646, %v682
        %v694 = vadd.f32 %v647, %v688
        %v695 = vadd.f32 %v648, %v689
        %v696 = vlaneseq
        %v697 = vshrl.u32 %v696, 7
        %v698 = vsub.s32 7, %v697
        %v699 = vrot.slane %v397, %v698
        %v700 = vlaneseq
        %v701 = vshrl.u32 %v700, 7
        %v702 = vsub.s32 7, %v701
        %v703 = vrot.slane %v398, %v702
        %706 = vrot.lane.b32.xlu0 %v699, 16
        %v707 = vpop.permute.xlu0 %706
        %708 = vrot.lane.b32.xlu0 %v703, 16
        %v709 = vpop.permute.xlu0 %708
        %vm710 = vcmask 130048
        %v711 = vsel %vm710, %v707, %v709
        %v715 = vmul.f32 %v394, %v707
        %v716 = vmul.f32 %v395, %v711
        %v717 = vmul.f32 %v394, %v709
        %718 = vset.pattern.permute.xlu0 7
        %719 = vperm.xlu0 %718, %v396
        %v720 = vpop.permute.xlu0 %719
        %v722 = vmul.f32 %v715, %v720
        %v723 = vmul.f32 %v716, %v720
        %v724 = vmul.f32 %v717, %v720
        %728 = vrot.lane.b32.xlu0 %v722, 95
        %v729 = vpop.permute.xlu0 %728
        %730 = vrot.lane.b32.xlu0 %v723, 95
        %v731 = vpop.permute.xlu0 %730
        %732 = vrot.lane.b32.xlu0 %v724, 95
        %v733 = vpop.permute.xlu0 %732
        %vm734 = vcmask 777216
        %v735 = vsel %vm734, %v729, %v731
        %v736 = vsel %vm734, %v731, %v733
        %v740 = vadd.f32 %v693, %v729
        %v741 = vadd.f32 %v694, %v735
        %v742 = vadd.f32 %v695, %v736
        %v743 = vlaneseq
        %v744 = vshrl.u32 %v743, 7
        %v745 = vsub.s32 0, %v744
        %v746 = vrot.slane %v399, %v745
        %v747 = vlaneseq
        %v748 = vshrl.u32 %v747, 7
        %v749 = vsub.s32 0, %v748
        %v750 = vrot.slane %v400, %v749
        %753 = vrot.lane.b32.xlu0 %v746, 17
        %v754 = vpop.permute.xlu0 %753
        %755 = vrot.lane.b32.xlu0 %v750, 17
        %v756 = vpop.permute.xlu0 %755
        %vm757 = vcmask 138240
        %v758 = vsel %vm757, %v754, %v756
        %v762 = vmul.f32 %v394, %v754
        %v763 = vmul.f32 %v395, %v758
        %v764 = vmul.f32 %v394, %v756
        %765 = vset.pattern.permute.xlu0 8
        %766 = vperm.xlu0 %765, %v396
        %v767 = vpop.permute.xlu0 %766
        %v769 = vmul.f32 %v762, %v767
        %v770 = vmul.f32 %v763, %v767
        %v771 = vmul.f32 %v764, %v767
        %775 = vrot.lane.b32.xlu0 %v769, 94
        %v776 = vpop.permute.xlu0 %775
        %777 = vrot.lane.b32.xlu0 %v770, 94
        %v778 = vpop.permute.xlu0 %777
        %779 = vrot.lane.b32.xlu0 %v771, 94
        %v780 = vpop.permute.xlu0 %779
        %vm781 = vcmask 769024
        %v782 = vsel %vm781, %v776, %v778
        %v783 = vsel %vm781, %v778, %v780
        %v787 = vadd.f32 %v740, %v776
        %v788 = vadd.f32 %v741, %v782
        %v789 = vadd.f32 %v742, %v783
        %v790 = vld [vmem:[%s4] sm:$0xff]
        %792 = vset.pattern.permute.xlu0 0
        %793 = vperm.xlu0 %792, %v790
        %v794 = vpop.permute.xlu0 %793
        %v796 = vadd.f32 %v787, %v794
        %v797 = vadd.f32 %v788, %v794
        %v798 = vadd.f32 %v789, %v794
        %v799 = vmax.f32 %v796, 0.0
        %v800 = vmax.f32 %v797, 0.0
        %v801 = vmax.f32 %v798, 0.0
        %v802 = vld [vmem:[%s5] sm:$0xf]
        %v803 = vld [vmem:[%s6] sm:$0xf]
        %805 = vset.pattern.permute.xlu0 0
        %806 = vperm.xlu0 %805, %v803
        %v807 = vpop.permute.xlu0 %806
        %812 = vrot.lane.b32.xlu0 %v799, 17
        %v813 = vpop.permute.xlu0 %812
        %814 = vrot.lane.b32.xlu0 %v800, 17
        %v815 = vpop.permute.xlu0 %814
        %816 = vrot.lane.b32.xlu0 %v801, 17
        %v817 = vpop.permute.xlu0 %816
        %v818 = vsel %vm757, %v813, %v815
        %v819 = vsel %vm757, %v815, %v817
        %vm822 = vcmask 64512
        %v824 = vsel %vm822, %v802, 0
        %826 = vmatprep.subr.mxu0 %v819
        %827 = vmatpush1.msra.mxu0 %v818
        %828 = vmatprep.subr.mxu0 0.0
        %829 = vmatpush1.msra.mxu0 0.0
        %830 = vmatprep.subr.mxu0 0.0
        %831 = vmatpush1.msra.mxu0 0.0
        %832 = vmatprep.subr.mxu0 0.0
        %833 = vmatpush1.msra.mxu0 0.0
        %834 = vmatprep.subr.mxu0 0.0
        %835 = vmatpush1.msra.mxu0 0.0
        %836 = vmatprep.subr.mxu0 0.0
        %837 = vmatpush1.msra.mxu0 0.0
        %838 = vmatprep.subr.mxu0 0.0
        %839 = vmatpush1.msra.mxu0 0.0
        %840 = vmatprep.subr.mxu0 0.0
        %841 = vmatpush1.msra.mxu0 0.0
        %842 = vmatprep.subr.mxu0 0.0
        %843 = vmatpush1.msra.mxu0 0.0
        %844 = vmatprep.subr.mxu0 0.0
        %845 = vmatpush1.msra.mxu0 0.0
        %846 = vmatprep.subr.mxu0 0.0
        %847 = vmatpush1.msra.mxu0 0.0
        %848 = vmatprep.subr.mxu0 0.0
        %849 = vmatpush1.msra.mxu0 0.0
        %850 = vmatprep.subr.mxu0 0.0
        %851 = vmatpush1.msra.mxu0 0.0
        %852 = vmatprep.subr.mxu0 0.0
        %853 = vmatpush1.msra.mxu0 0.0
        %854 = vmatprep.subr.mxu0 0.0
        %855 = vmatpush1.msra.mxu0 0.0
        %856 = vmatprep.subr.mxu0 0.0
        %857 = vmatpush1.msra.mxu0 0.0
        %858 = vmatprep.subr.mxu0 0.0
        %859 = vmatpush1.msra.mxu0 0.0
        %860 = vmatprep.subr.mxu0 0.0
        %861 = vmatpush1.msra.mxu0 0.0
        %862 = vmatprep.subr.mxu0 0.0
        %863 = vmatpush1.msra.mxu0 0.0
        %864 = vmatprep.subr.mxu0 0.0
        %865 = vmatpush1.msra.mxu0 0.0
        %866 = vmatprep.subr.mxu0 0.0
        %867 = vmatpush1.msra.mxu0 0.0
        %868 = vmatprep.subr.mxu0 0.0
        %869 = vmatpush1.msra.mxu0 0.0
        %870 = vmatprep.subr.mxu0 0.0
        %871 = vmatpush1.msra.mxu0 0.0
        %872 = vmatprep.subr.mxu0 0.0
        %873 = vmatpush1.msra.mxu0 0.0
        %874 = vmatprep.subr.mxu0 0.0
        %875 = vmatpush1.msra.mxu0 0.0
        %876 = vmatprep.subr.mxu0 0.0
        %877 = vmatpush1.msra.mxu0 0.0
        %878 = vmatprep.subr.mxu0 0.0
        %879 = vmatpush1.msra.mxu0 0.0
        %880 = vmatprep.subr.mxu0 0.0
        %881 = vmatpush1.msra.mxu0 0.0
        %882 = vmatprep.subr.mxu0 0.0
        %883 = vmatpush1.msra.mxu0 0.0
        %884 = vmatprep.subr.mxu0 0.0
        %885 = vmatpush1.msra.mxu0 0.0
        %886 = vmatprep.subr.mxu0 0.0
        %887 = vmatpush1.msra.mxu0 0.0
        %888 = vmatprep.subr.mxu0 0.0
        %889 = vmatpush1.msra.mxu0 0.0
        %890 = vmatprep.mubr.f32.mxu0 0.0
        %891 = vmatmul.mubr.f32.gmra.mrb[0].mxu0 %v824
        %v892 = vpop.f32.mrb[0].mxu0
        %v893 = vadd.f32 %v807, %v892
        %v894 = vpop.f32.mrb[0].mxu0
        %v895 = vadd.f32 %v807, %v894
        %896 = vdwg.mxu0
        %v898 = vadd.f32 %v893, %v304
        %v899 = vadd.f32 %v895, %v313
        %v902 = vcombine.low %v898, %v899
        %904 = vst [vmem:[%s298] sm:$0xff] %v902
        %s905 = sand.u32 %s203, 1
        %s906 = scalar_lea.sflag [#allocation3], %s905
        %s907 = sand.u32 %s203, 1
        %s908 = smul.addr %s907, 8
        %s909 = scalar_lea.vmem [#allocation2], %s908
        // Predicated region
        $region53: #{tpu_custom_call.1} parent=51 // pred_check
          %p910 = pneg %p213
        $region54: #{tpu_custom_call.1} parent=51 // pred_check_branch
          %912 = sbr.rel (%p910) target = $region56
        $region55: #{tpu_custom_call.1} parent=51 // pred_region
          %s914 = ssub.s32 128, 128
          %915 = vsyncadd %s906, %s914
          %s916 = smul.addr %s22, 2
          %s917 = smul.addr %s916, 64
          %s918 = scalar_lea.hbm %s8, %s917
          %s920 = sshll.u32 %s909, 4
          %s921 = int_to_ptr.vmem [resolvable:$true] %s920
          %923 = dma.vmem_to_hbm [thread:$0]  %s921, 128, %s918, %s906
        $region56: #{tpu_custom_call.1} parent=51 // pred_fallthru
          _
      $region52: #{tpu_custom_call.1} parent=5 // pred_fallthru
        _
      %p924 = scmp.le.s32.totalorder 2, %s17
      // Predicated region
      $region57: #{tpu_custom_call.1} parent=5 // pred_check
        %p925 = pneg %p924
      $region58: #{tpu_custom_call.1} parent=5 // pred_check_branch
        %927 = sbr.rel (%p925) target = $region60
      $region59: #{tpu_custom_call.1} parent=5 // pred_region
        %s928 = ssub.s32 %s17, 2
        // Predicated region
        $region61: #{tpu_custom_call.1} parent=59 // pred_check
          %p929 = pneg %p219
        $region62: #{tpu_custom_call.1} parent=59 // pred_check_branch
          %931 = sbr.rel (%p929) target = $region64
        $region63: #{tpu_custom_call.1} parent=59 // pred_region
          %s932 = sand.u32 %s204, 1
          %s933 = scalar_lea.sflag [#allocation3], %s932
          %s934 = sand.u32 %s204, 1
          %s935 = smul.addr %s934, 8
          %s936 = scalar_lea.vmem [#allocation2], %s935
          %937 = dma.done %s933, 128
        $region64: #{tpu_custom_call.1} parent=59 // pred_fallthru
          _
      $region60: #{tpu_custom_call.1} parent=5 // pred_fallthru
        _
    $region6: #{tpu_custom_call.1} parent=1 // loop_footer
      %s21 = sadd.s32 1, %s17
    $region7: #{tpu_custom_call.1} parent=1 // loop_footer_branch
      %16 = sbr.rel target = $region3
    $region8: #{tpu_custom_call.1} parent=1 // loop_exit
      _
    %938 = vsyncpa [#allocation3], 1
    %s939 = scalar_lea.sflag [#allocation3], 1
    %940 = vsyncpa %s939, 1

</llo_original>
